<compile_context>
chip_gen: v7x
topology: tpu7x:2x2x1
jax: 0.10.0
libtpu: 0.0.40
codegen_flags: <defaults>
</compile_context>

<pallas_src>
import functools

import jax
import jax.numpy as jnp
from jax import lax
from jax.experimental import pallas as pl
from jax.experimental.pallas import tpu as pltpu

_LANE = 128
_SUB_ROWS = 256                      # rows per inner sub-slice (32 f32 vregs/operand)
_MAX_CHUNK_BYTES = 2 * 1024 * 1024   # per-input DMA tile bytes (HBM-bound => big tiles)
_VMEM_LIMIT_BYTES = 32 * 1024 * 1024  # explicit scoped-VMEM request (safe on v5e/v6e/v7x)


def _round_up(x: int, m: int) -> int:
    return ((x + m - 1) // m) * m


def _mse_sum_kernel(x_ref, y_ref, out_ref, *, inv_hw: float, total_rows: int,
                    chunk_rows: int, num_sub: int, cps: int, needs_mask: bool):
    """One (chunk_rows, 128) tile of one (batch, split) slot.

    x_ref, y_ref : (chunk_rows, 128) VMEM tiles (batch dim squeezed), native dtype
    out_ref      : (8, 128) float32 output block, used directly as the accumulator
                   (zeroed at c == 0, auto-written back when the (b, s) block changes)
    """
    s = pl.program_id(1)
    c = pl.program_id(2)

    @pl.when(c == 0)
    def _init():
        out_ref[...] = jnp.zeros_like(out_ref)

    # Global row offset of this chunk (for masking the final partial chunk).
    base = (s * cps + c) * chunk_rows

    def body(i, carry):
        off = pl.multiple_of(i * _SUB_ROWS, _SUB_ROWS)
        x = x_ref[pl.ds(off, _SUB_ROWS), :].astype(jnp.float32)
        y = y_ref[pl.ds(off, _SUB_ROWS), :].astype(jnp.float32)
        d = x - y
        sq = d * d
        if needs_mask:
            # Zero out rows past the end of the flattened sample; stale VMEM rows
            # of the partial chunk (possibly NaN/Inf) are discarded by the select.
            rows = lax.broadcasted_iota(jnp.int32, (_SUB_ROWS, 1), 0) + (base + off)
            sq = jnp.where(rows < total_rows, sq, 0.0)
        # (SUB_ROWS,128) -> (SUB_ROWS//8, 8, 128) is vreg-aligned; the axis-0 sum is
        # pure VALU vreg adds (no cross-sublane/lane XLU work in the hot loop).
        part = jnp.sum(sq.reshape(_SUB_ROWS // 8, 8, _LANE), axis=0)
        out_ref[...] += part * inv_hw
        return carry

    lax.fori_loop(0, num_sub, body, 0, unroll=True)


def custom_mse_loss(inp, target, reduction: str = "mean"):
    assert inp.shape == target.shape and inp.ndim == 5
    B, T, C, H, W = inp.shape
    N = T * C * H * W
    inv_hw = 1.0 / float(H * W)

    x = inp.reshape(B, N)
    y = target.reshape(B, N)

    # Rare fallback: only when the flattened sample is lane-ragged (N % 128 != 0)
    # do we pay a padding copy; padded zeros contribute (0-0)^2 == 0.
    lane_pad = (-N) % _LANE
    if lane_pad:
        x = jnp.pad(x, ((0, 0), (0, lane_pad)))
        y = jnp.pad(y, ((0, 0), (0, lane_pad)))
    n_pad = N + lane_pad
    total_rows = n_pad // _LANE

    # Lane-dense (B, rows, 128) view — free reshape (no data movement) when no pad.
    x = x.reshape(B, total_rows, _LANE)
    y = y.reshape(B, total_rows, _LANE)

    itemsize = jnp.dtype(inp.dtype).itemsize
    # ~2 MiB DMA tiles: 4096 rows for f32, 8192 for bf16 (same VMEM footprint).
    max_rows = max(_SUB_ROWS,
                   (_MAX_CHUNK_BYTES // (_LANE * itemsize)) // _SUB_ROWS * _SUB_ROWS)

    num_chunks = pl.cdiv(total_rows, max_rows)
    if num_chunks > 1:
        num_chunks = 2 * pl.cdiv(num_chunks, 2)   # prefer an even chunk count
    chunk_rows = min(max_rows, _round_up(pl.cdiv(total_rows, num_chunks), _SUB_ROWS))
    num_chunks = pl.cdiv(total_rows, chunk_rows)

    # 2-way split of the reduction across a second "parallel" grid axis so both
    # TensorCores (v7x megacore) stream even when B is small. Only enabled when it
    # divides evenly => zero wasted DMA on single-TC chips (v5e/v6e).
    split = 2 if (num_chunks >= 2 and num_chunks % 2 == 0) else 1
    cps = num_chunks // split
    needs_mask = (total_rows % chunk_rows) != 0

    kernel = functools.partial(
        _mse_sum_kernel, inv_hw=inv_hw, total_rows=total_rows,
        chunk_rows=chunk_rows, num_sub=chunk_rows // _SUB_ROWS, cps=cps,
        needs_mask=needs_mask)

    cost = pl.CostEstimate(
        flops=3 * B * N,                                   # sub, mul, add
        transcendentals=0,
        bytes_accessed=2 * B * N * itemsize + B * split * 8 * _LANE * 4)

    partials = pl.pallas_call(
        kernel,
        out_shape=jax.ShapeDtypeStruct((B, split, 8, _LANE), jnp.float32),
        grid=(B, split, cps),
        in_specs=[
            pl.BlockSpec((None, chunk_rows, _LANE),
                         lambda b, s, c: (b, s * cps + c, 0)),
            pl.BlockSpec((None, chunk_rows, _LANE),
                         lambda b, s, c: (b, s * cps + c, 0)),
            # NOTE: pipeline_mode=pl.Buffered(3) is a further ~few-% option here if
            # profiling shows DMA-issue bubbles; default double-buffering kept.
        ],
        # Blocked per-(b, s) output tile => disjoint per-core writebacks (megacore-safe).
        out_specs=pl.BlockSpec((None, None, 8, _LANE), lambda b, s, c: (b, s, 0, 0)),
        compiler_params=pltpu.CompilerParams(
            dimension_semantics=("parallel", "parallel", "arbitrary"),
            vmem_limit_bytes=_VMEM_LIMIT_BYTES),
        cost_estimate=cost,
    )(x, y)

    # Tiny epilogue: fold the (split, 8, 128) partial sums per batch element.
    per_batch = jnp.sum(partials, axis=(1, 2, 3))

    if reduction == "mean":
        return jnp.mean(per_batch)
    elif reduction == "sum":
        return jnp.sum(per_batch)
    elif reduction == "none":
        return per_batch
    else:
        raise NotImplementedError(reduction)


class CustomMSELoss:
    """JAX/Pallas port of pdearena CustomMSELoss."""

    def __init__(self, reduction: str = "mean") -> None:
        self.reduction = reduction

    def __call__(self, inp, target):
        return custom_mse_loss(inp, target, reduction=self.reduction)


def _reference(x, y, reduction):
    loss = (x.astype(jnp.float32) - y.astype(jnp.float32)) ** 2
    red = jnp.sum(jnp.mean(loss, axis=(3, 4)), axis=(1, 2))
    if reduction == "mean":
        return jnp.mean(red)
    if reduction == "sum":
        return jnp.sum(red)
    return red


if __name__ == "__main__":
    key = jax.random.PRNGKey(0)
    k1, k2, k3, k4, k5, k6 = jax.random.split(key, 6)

    # (batch, time, fields, H, W) — small shapes consistent with the module.
    B, T, C, H, W = 2, 4, 3, 16, 16
    x = jax.random.normal(k1, (B, T, C, H, W), dtype=jnp.float32)
    y = jax.random.normal(k2, (B, T, C, H, W), dtype=jnp.float32)

    for red in ("mean", "sum", "none"):
        out = jax.block_until_ready(CustomMSELoss(reduction=red)(x, y))
        ref = _reference(x, y, red)
        assert out.shape == ref.shape
        assert jnp.allclose(out, ref, rtol=1e-5, atol=1e-5), (red, out, ref)

    # Odd spatial sizes: exercises the lane-pad fallback (N % 128 != 0) + row masking.
    x2 = jax.random.normal(k3, (2, 3, 2, 10, 10), dtype=jnp.float32)
    y2 = jax.random.normal(k4, (2, 3, 2, 10, 10), dtype=jnp.float32)
    out2 = jax.block_until_ready(custom_mse_loss(x2, y2, reduction="mean"))
    ref2 = _reference(x2, y2, "mean")
    assert jnp.allclose(out2, ref2, rtol=1e-5, atol=1e-5), (out2, ref2)

    # Medium case: exercises multi-chunk streaming + 2-way core split (no masking).
    x3 = jax.random.normal(k5, (1, 4, 4, 256, 256), dtype=jnp.float32)
    y3 = jax.random.normal(k6, (1, 4, 4, 256, 256), dtype=jnp.float32)
    out3 = jax.block_until_ready(custom_mse_loss(x3, y3, reduction="mean"))
    ref3 = _reference(x3, y3, "mean")
    assert jnp.allclose(out3, ref3, rtol=1e-4, atol=1e-4), (out3, ref3)

    # bf16 streaming path (half the HBM bytes; upcast to f32 inside the kernel).
    xb, yb = x.astype(jnp.bfloat16), y.astype(jnp.bfloat16)
    out_b = jax.block_until_ready(custom_mse_loss(xb, yb, reduction="mean"))
    ref_b = _reference(xb, yb, "mean")
    assert jnp.allclose(out_b, ref_b, rtol=1e-3, atol=1e-3), (out_b, ref_b)

    print("KERNEL_OK")
</pallas_src>

<mosaic_0001>
module attributes {stable_mosaic.version = 11 : i64} {
  func.func @_mse_sum_kernel(%arg0: i32, %arg1: i32, %arg2: i32, %arg3: memref<1x256x128xf32, #tpu.memory_space<vmem>>, %arg4: memref<1x256x128xf32, #tpu.memory_space<vmem>>, %arg5: memref<1x1x8x128xf32, #tpu.memory_space<vmem>>) attributes {dimension_semantics = [#tpu.dimension_semantics<parallel>, #tpu.dimension_semantics<parallel>, #tpu.dimension_semantics<arbitrary>], iteration_bounds = array<i64: 2, 1, 1>, scalar_prefetch = 0 : i64, scratch_operands = 0 : i64, tpu.core_type = #tpu.core_type<tc>, window_params = [{transform_indices = @transform_0, window_bounds = array<i64: 1, 256, 128>}, {transform_indices = @transform_1, window_bounds = array<i64: 1, 256, 128>}, {transform_indices = @transform_2, window_bounds = array<i64: 1, 1, 8, 128>}]} {
    %c0_i32 = arith.constant 0 : i32
    %0 = arith.cmpi eq, %arg2, %c0_i32 : i32
    %1 = arith.extui %0 : i1 to i32
    %c0_i32_0 = arith.constant 0 : i32
    %2 = arith.cmpi ne, %1, %c0_i32_0 : i32
    scf.if %2 {
      %cst_17 = arith.constant 0.000000e+00 : f32
      %36 = vector.broadcast %cst_17 : f32 to vector<8x128xf32>
      %c0_18 = arith.constant 0 : index
      %c0_19 = arith.constant 0 : index
      %c0_20 = arith.constant 0 : index
      %c0_21 = arith.constant 0 : index
      %37 = vector.load %arg5[%c0_18, %c0_19, %c0_20, %c0_21] : memref<1x1x8x128xf32, #tpu.memory_space<vmem>>, vector<1x1x8x128xf32>
      %38 = vector.shape_cast %37 : vector<1x1x8x128xf32> to vector<8x128xf32>
      %39 = vector.shape_cast %36 : vector<8x128xf32> to vector<1x1x8x128xf32>
      tpu.vector_store %arg5[%c0_18, %c0_19, %c0_20, %c0_21], %39 {strides = array<i32>} : memref<1x1x8x128xf32, #tpu.memory_space<vmem>>, vector<1x1x8x128xf32>,
    } else {
    }
    %c1_i32 = arith.constant 1 : i32
    %3 = arith.muli %arg1, %c1_i32 : i32
    %4 = arith.addi %3, %arg2 : i32
    %c256_i32 = arith.constant 256 : i32
    %5 = arith.muli %4, %c256_i32 : i32
    %c0_i32_1 = arith.constant 0 : i32
    %c256_i32_2 = arith.constant 256 : i32
    %6 = arith.muli %c0_i32_1, %c256_i32_2 : i32
    %7 = tpu.assume_multiple %6, 256 : i32
    %c0 = arith.constant 0 : index
    %8 = arith.index_cast %7 : i32 to index
    %c0_3 = arith.constant 0 : index
    %9 = vector.load %arg3[%c0, %8, %c0_3] : memref<1x256x128xf32, #tpu.memory_space<vmem>>, vector<1x256x128xf32>
    %10 = vector.shape_cast %9 : vector<1x256x128xf32> to vector<256x128xf32>
    %c0_4 = arith.constant 0 : index
    %11 = arith.index_cast %7 : i32 to index
    %c0_5 = arith.constant 0 : index
    %12 = vector.load %arg4[%c0_4, %11, %c0_5] : memref<1x256x128xf32, #tpu.memory_space<vmem>>, vector<1x256x128xf32>
    %13 = vector.shape_cast %12 : vector<1x256x128xf32> to vector<256x128xf32>
    %14 = arith.subf %10, %13 : vector<256x128xf32>
    %15 = arith.mulf %14, %14 : vector<256x128xf32>
    %16 = tpu.iota {dimensions = array<i32: 0>} : vector<256x1xi32>
    %17 = arith.addi %5, %7 : i32
    %18 = vector.broadcast %17 : i32 to vector<256x1xi32>
    %19 = arith.addi %16, %18 : vector<256x1xi32>
    %c24_i32 = arith.constant 24 : i32
    %20 = vector.broadcast %c24_i32 : i32 to vector<256x1xi32>
    %21 = arith.cmpi slt, %19, %20 : vector<256x1xi32>
    %cst = arith.constant 0.000000e+00 : f32
    %22 = vector.shape_cast %21 : vector<256x1xi1> to vector<256x1xi1>
    %23 = vector.broadcast %22 : vector<256x1xi1> to vector<256x128xi1>
    %24 = vector.broadcast %cst : f32 to vector<256x128xf32>
    %25 = arith.select %23, %15, %24 : vector<256x128xi1>, vector<256x128xf32>
    %26 = vector.shape_cast %25 : vector<256x128xf32> to vector<32x8x128xf32>
    %cst_6 = arith.constant dense<0.000000e+00> : vector<8x128xf32>
    %27 = vector.multi_reduction <add>, %26, %cst_6 [0] : vector<32x8x128xf32> to vector<8x128xf32>
    %c0_7 = arith.constant 0 : index
    %c0_8 = arith.constant 0 : index
    %c0_9 = arith.constant 0 : index
    %c0_10 = arith.constant 0 : index
    %28 = vector.load %arg5[%c0_7, %c0_8, %c0_9, %c0_10] : memref<1x1x8x128xf32, #tpu.memory_space<vmem>>, vector<1x1x8x128xf32>
    %29 = vector.shape_cast %28 : vector<1x1x8x128xf32> to vector<8x128xf32>
    %cst_11 = arith.constant 3.906250e-03 : f32
    %30 = vector.broadcast %cst_11 : f32 to vector<8x128xf32>
    %31 = arith.mulf %27, %30 : vector<8x128xf32>
    %32 = arith.addf %29, %31 : vector<8x128xf32>
    %c0_12 = arith.constant 0 : index
    %c0_13 = arith.constant 0 : index
    %c0_14 = arith.constant 0 : index
    %c0_15 = arith.constant 0 : index
    %33 = vector.load %arg5[%c0_12, %c0_13, %c0_14, %c0_15] : memref<1x1x8x128xf32, #tpu.memory_space<vmem>>, vector<1x1x8x128xf32>
    %34 = vector.shape_cast %33 : vector<1x1x8x128xf32> to vector<8x128xf32>
    %35 = vector.shape_cast %32 : vector<8x128xf32> to vector<1x1x8x128xf32>
    tpu.vector_store %arg5[%c0_12, %c0_13, %c0_14, %c0_15], %35 {strides = array<i32>} : memref<1x1x8x128xf32, #tpu.memory_space<vmem>>, vector<1x1x8x128xf32>,
    %c1_i32_16 = arith.constant 1 : i32
    return
  }
  func.func @transform_0(%arg0: i32, %arg1: i32, %arg2: i32) -> (i32, i32, i32) {
    %c1_i32 = arith.constant 1 : i32
    %0 = arith.muli %arg1, %c1_i32 : i32
    %1 = arith.addi %0, %arg2 : i32
    %c0_i32 = arith.constant 0 : i32
    %c0_i32_0 = arith.constant 0 : i32
    return %arg0, %1, %c0_i32 : i32, i32, i32
  }
  func.func @transform_1(%arg0: i32, %arg1: i32, %arg2: i32) -> (i32, i32, i32) {
    %c1_i32 = arith.constant 1 : i32
    %0 = arith.muli %arg1, %c1_i32 : i32
    %1 = arith.addi %0, %arg2 : i32
    %c0_i32 = arith.constant 0 : i32
    %c0_i32_0 = arith.constant 0 : i32
    return %arg0, %1, %c0_i32 : i32, i32, i32
  }
  func.func @transform_2(%arg0: i32, %arg1: i32, %arg2: i32) -> (i32, i32, i32, i32) {
    %c0_i32 = arith.constant 0 : i32
    %c0_i32_0 = arith.constant 0 : i32
    %c0_i32_1 = arith.constant 0 : i32
    return %arg0, %arg1, %c0_i32, %c0_i32_0 : i32, i32, i32, i32
  }
}

</mosaic_0001>

<llo_original>
// kernel: tpu_custom_call.1
$region0: #{tpu_custom_call.1}
  #allocation0 [shape = 'u32[]', space=smem, size = 0x4, offset = 0x4, fixed_abs, tag = 'smem constant byte address 0x4 - core index']
  #allocation1 [shape = 'u32[144,128]{1,0:T(1,128)}', space=vmem, size = 0x12000, scoped, tag = 'internal scratch']
  %s0 = inlined_call_operand.hbm [shape: f32[2,24,128], index: 0, kind: input, shape index: {}]
  %s1 = inlined_call_operand.hbm [shape: f32[2,24,128], index: 1, kind: input, shape index: {}]
  %s2 = inlined_call_operand.hbm [shape: f32[2,1,8,128], index: 2, kind: output, shape index: {}]
  %s3 = sld [smem:[#allocation0]]
  $region53: #{tpu_custom_call.1} parent=0
    _
  %s5 = ssub.s32 1, %s3
  %s6 = scalar_select 0, %s5, %s3
  $region1: #{tpu_custom_call.1} parent=0
    #allocation2 [shape = 'u8[262144]{0}', space=vmem, size = 0x40000, scoped, tag = 'input window, operand 0']
    #allocation3 [shape = 's32[2]{0}', space=sflag, size = 0x8, scoped, tag = 'scoped memory for tpu_custom_call.1']
    #allocation4 [shape = 's32[2]{0}', space=sflag, size = 0x8, scoped, tag = 'scoped memory for tpu_custom_call.1']
    #allocation5 [shape = 'u8[262144]{0}', space=vmem, size = 0x40000, scoped, tag = 'input window, operand 1']
    #allocation6 [shape = 's32[2]{0}', space=sflag, size = 0x8, scoped, tag = 'scoped memory for tpu_custom_call.1']
    #allocation7 [shape = 'u8[8192]{0}', space=vmem, size = 0x2000, scoped, tag = 'output window, operand 0']
    %7 = vsyncpa [#allocation3], 0
    %s8 = scalar_lea.sflag [#allocation3], 1
    %9 = vsyncpa %s8, 0
    %10 = vsyncpa [#allocation6], 0
    %s11 = scalar_lea.sflag [#allocation6], 1
    %12 = vsyncpa %s11, 0
    %13 = vsyncpa [#allocation4], 0
    %s14 = scalar_lea.sflag [#allocation4], 1
    %15 = vsyncpa %s14, 0
    loop: start=0, step=1, limit=4
    $region2: #{tpu_custom_call.1} parent=1 // loop_pre_header
      _
    $region3: #{tpu_custom_call.1} parent=1 // loop_header
      %s17 = sphi 0, %s21
      %p18 = scmp.ge.s32.totalorder %s17, 4
      %s24 = sphi 0, %s43
      %s25 = sphi 0, %s39
      %s26 = sphi 0, %s35
      %s27 = sphi 0, %s24
      %s28 = sphi 0, %s25
      %s29 = sphi 0, %s26
      %s30 = sphi 0, %s27
      %s31 = sphi 0, %s28
      %s32 = sphi 0, %s29
      %s50 = sphi 0, %s52
      %s53 = sphi 0, %s50
      %s54 = sphi 0, %s53
      %s70 = sphi 0, %s54
      %s80 = sphi 0, %s82
      %s83 = sphi 0, %s80
      %s84 = sphi 0, %s83
      %s100 = sphi 0, %s84
      %s108 = sphi 0, %s110
      %s111 = sphi 0, %s108
      %s112 = sphi 0, %s111
      %s128 = sphi 0, %s112
    $region4: #{tpu_custom_call.1} parent=1 // loop_header_branch
      %20 = sbr.rel (%p18) target = $region8
    $region5: #{tpu_custom_call.1} parent=1 // loop_body
      %s22 = ssub.s32 %s17, 1
      %s23 = ssub.s32 %s17, 2
      %s33 = sadd.s32 1, %s26
      %p34 = scmp.ge.s32.totalorder %s33, 1
      %s35 = scalar_select %p34, 0, %s33
      %s36 = sadd.s32 1, %s25
      %s37 = scalar_select %p34, %s36, %s25
      %p38 = scmp.ge.s32.totalorder %s37, 1
      %s39 = scalar_select %p38, 0, %s37
      %s40 = sadd.s32 1, %s24
      %s41 = scalar_select %p38, %s40, %s24
      %p42 = scmp.ge.s32.totalorder %s41, 2
      %s43 = scalar_select %p42, 0, %s41
      %s44 = sadd.s32 %s25, %s26
      %s45 = sadd.s32 %s39, %s35
      %s46 = ssub.s32 %s24, %s43
      %s47 = ssub.s32 %s44, %s45
      %s48 = sor.u32 %s46, %s47
      %p49 = scmp.eq.s32.totalorder %s48, 0
      %s51 = sadd.s32 %s50, 1
      %s52 = scalar_select %p49, %s50, %s51
      %p55 = pneg %p49
      %p56 = scmp.eq.s32.totalorder %s17, 1
      %p57 = por %p55, %p56
      %p58 = scmp.ne.s32.totalorder %s50, %s53
      %p59 = scmp.eq.s32.totalorder %s17, 0
      %p60 = por %p58, %p59
      %p61 = scmp.ne.s32.totalorder %s50, %s53
      %p62 = scmp.eq.s32.totalorder %s22, 1
      %p63 = por %p61, %p62
      %p64 = scmp.ne.s32.totalorder %s53, %s54
      %p65 = scmp.eq.s32.totalorder %s22, 0
      %p66 = por %p64, %p65
      %p67 = scmp.ne.s32.totalorder %s53, %s54
      %p68 = scmp.eq.s32.totalorder %s23, 1
      %p69 = por %p67, %p68
      %p71 = scmp.ne.s32.totalorder %s54, %s70
      %p72 = scmp.eq.s32.totalorder %s23, 0
      %p73 = por %p71, %p72
      %s74 = sadd.s32 %s25, %s26
      %s75 = sadd.s32 %s39, %s35
      %s76 = ssub.s32 %s24, %s43
      %s77 = ssub.s32 %s74, %s75
      %s78 = sor.u32 %s76, %s77
      %p79 = scmp.eq.s32.totalorder %s78, 0
      %s81 = sadd.s32 %s80, 1
      %s82 = scalar_select %p79, %s80, %s81
      %p85 = pneg %p79
      %p86 = scmp.eq.s32.totalorder %s17, 1
      %p87 = por %p85, %p86
      %p88 = scmp.ne.s32.totalorder %s80, %s83
      %p89 = scmp.eq.s32.totalorder %s17, 0
      %p90 = por %p88, %p89
      %p91 = scmp.ne.s32.totalorder %s80, %s83
      %p92 = scmp.eq.s32.totalorder %s22, 1
      %p93 = por %p91, %p92
      %p94 = scmp.ne.s32.totalorder %s83, %s84
      %p95 = scmp.eq.s32.totalorder %s22, 0
      %p96 = por %p94, %p95
      %p97 = scmp.ne.s32.totalorder %s83, %s84
      %p98 = scmp.eq.s32.totalorder %s23, 1
      %p99 = por %p97, %p98
      %p101 = scmp.ne.s32.totalorder %s84, %s100
      %p102 = scmp.eq.s32.totalorder %s23, 0
      %p103 = por %p101, %p102
      %s104 = ssub.s32 %s24, %s43
      %s105 = ssub.s32 %s25, %s39
      %s106 = sor.u32 %s104, %s105
      %p107 = scmp.eq.s32.totalorder %s106, 0
      %s109 = sadd.s32 %s108, 1
      %s110 = scalar_select %p107, %s108, %s109
      %p113 = pneg %p107
      %p114 = scmp.eq.s32.totalorder %s17, 1
      %p115 = por %p113, %p114
      %p116 = scmp.ne.s32.totalorder %s108, %s111
      %p117 = scmp.eq.s32.totalorder %s17, 0
      %p118 = por %p116, %p117
      %p119 = scmp.ne.s32.totalorder %s108, %s111
      %p120 = scmp.eq.s32.totalorder %s22, 1
      %p121 = por %p119, %p120
      %p122 = scmp.ne.s32.totalorder %s111, %s112
      %p123 = scmp.eq.s32.totalorder %s22, 0
      %p124 = por %p122, %p123
      %p125 = scmp.ne.s32.totalorder %s111, %s112
      %p126 = scmp.eq.s32.totalorder %s23, 1
      %p127 = por %p125, %p126
      %p129 = scmp.ne.s32.totalorder %s112, %s128
      %p130 = scmp.eq.s32.totalorder %s23, 0
      %p131 = por %p129, %p130
      %p132 = scmp.le.s32.totalorder 1, %s17
      %p133 = scmp.lt.s32.totalorder %s17, 3
      %p134 = pnand %p132, %p133
      %p135 = pneg %p134
      // Predicated region
      $region9: #{tpu_custom_call.1} parent=5 // pred_check
        _
      $region10: #{tpu_custom_call.1} parent=5 // pred_check_branch
        %137 = sbr.rel (%p134) target = $region12
      $region11: #{tpu_custom_call.1} parent=5 // pred_region
        %s138 = ssub.s32 %s17, 1
      $region12: #{tpu_custom_call.1} parent=5 // pred_fallthru
        _
      %p139 = scmp.lt.s32.totalorder %s17, 2
      // Predicated region
      $region13: #{tpu_custom_call.1} parent=5 // pred_check
        %p140 = pneg %p139
      $region14: #{tpu_custom_call.1} parent=5 // pred_check_branch
        %142 = sbr.rel (%p140) target = $region16
      $region15: #{tpu_custom_call.1} parent=5 // pred_region
        // Predicated region
        $region17: #{tpu_custom_call.1} parent=15 // pred_check
          %p143 = pneg %p60
        $region18: #{tpu_custom_call.1} parent=15 // pred_check_branch
          %145 = sbr.rel (%p143) target = $region20
        $region19: #{tpu_custom_call.1} parent=15 // pred_region
          %s146 = sand.u32 %s50, 1
          %s147 = scalar_lea.sflag [#allocation3], %s146
          %s148 = sand.u32 %s50, 1
          %s149 = smul.addr %s148, 256
          %s150 = scalar_lea.vmem [#allocation2], %s149
          %s151 = sadd.s32 %s25, %s26
          %s152 = smul.u32 32, %s151
          %s153 = ssub.s32 3, %s152
          %s154 = smul.u32 128, %s153
          %s156 = ssub.s32 4096, %s154
          %157 = vsyncadd %s147, %s156
          %p158 = scmp.ne.s32.totalorder 0, %s154
          %s159 = smul.addr %s24, 3
          %s160 = sadd.s32 %s152, %s159
          %s161 = smul.addr %s160, 128
          %s162 = scalar_lea.hbm %s0, %s161
          %s163 = smul.u32 8, %s153
          %s164 = sshll.u32 %s150, 4
          %s165 = int_to_ptr.vmem [resolvable:$true] %s164
          %s166 = sshll.u32 %s163, 4
          %170 = dma.hbm_to_vmem [thread:$0]  (%p158), %s162, %s166, %s165, %s147, 128, 128, 8
        $region20: #{tpu_custom_call.1} parent=15 // pred_fallthru
          _
        // Predicated region
        $region21: #{tpu_custom_call.1} parent=15 // pred_check
          %p171 = pneg %p90
        $region22: #{tpu_custom_call.1} parent=15 // pred_check_branch
          %173 = sbr.rel (%p171) target = $region24
        $region23: #{tpu_custom_call.1} parent=15 // pred_region
          %s174 = sand.u32 %s80, 1
          %s175 = scalar_lea.sflag [#allocation6], %s174
          %s176 = sand.u32 %s80, 1
          %s177 = smul.addr %s176, 256
          %s178 = scalar_lea.vmem [#allocation5], %s177
          %s179 = sadd.s32 %s25, %s26
          %s180 = smul.u32 32, %s179
          %s181 = ssub.s32 3, %s180
          %s182 = smul.u32 128, %s181
          %s184 = ssub.s32 4096, %s182
          %185 = vsyncadd %s175, %s184
          %p186 = scmp.ne.s32.totalorder 0, %s182
          %s187 = smul.addr %s24, 3
          %s188 = sadd.s32 %s180, %s187
          %s189 = smul.addr %s188, 128
          %s190 = scalar_lea.hbm %s1, %s189
          %s191 = smul.u32 8, %s181
          %s192 = sshll.u32 %s178, 4
          %s193 = int_to_ptr.vmem [resolvable:$true] %s192
          %s194 = sshll.u32 %s191, 4
          %198 = dma.hbm_to_vmem [thread:$0]  (%p186), %s190, %s194, %s193, %s175, 128, 128, 8
        $region24: #{tpu_custom_call.1} parent=15 // pred_fallthru
          _
      $region16: #{tpu_custom_call.1} parent=5 // pred_fallthru
        _
      %p199 = scmp.le.s32.totalorder 1, %s17
      %p200 = scmp.lt.s32.totalorder %s17, 3
      %p201 = pnand %p199, %p200
      %p202 = pneg %p201
      // Predicated region
      $region25: #{tpu_custom_call.1} parent=5 // pred_check
        _
      $region26: #{tpu_custom_call.1} parent=5 // pred_check_branch
        %204 = sbr.rel (%p201) target = $region28
      $region27: #{tpu_custom_call.1} parent=5 // pred_region
        %s205 = ssub.s32 %s17, 1
        %s206 = sand.u32 %s53, 1
        %s207 = scalar_lea.sflag [#allocation3], %s206
        %s208 = sand.u32 %s53, 1
        %s209 = smul.addr %s208, 256
        %s210 = scalar_lea.vmem [#allocation2], %s209
        // Predicated region
        $region29: #{tpu_custom_call.1} parent=27 // pred_check
          %p211 = pneg %p66
        $region30: #{tpu_custom_call.1} parent=27 // pred_check_branch
          %213 = sbr.rel (%p211) target = $region32
        $region31: #{tpu_custom_call.1} parent=27 // pred_region
          %214 = dma.done %s207, 4096
        $region32: #{tpu_custom_call.1} parent=27 // pred_fallthru
          _
        %s215 = sand.u32 %s83, 1
        %s216 = scalar_lea.sflag [#allocation6], %s215
        %s217 = sand.u32 %s83, 1
        %s218 = smul.addr %s217, 256
        %s219 = scalar_lea.vmem [#allocation5], %s218
        // Predicated region
        $region33: #{tpu_custom_call.1} parent=27 // pred_check
          %p220 = pneg %p96
        $region34: #{tpu_custom_call.1} parent=27 // pred_check_branch
          %222 = sbr.rel (%p220) target = $region36
        $region35: #{tpu_custom_call.1} parent=27 // pred_region
          %223 = dma.done %s216, 4096
        $region36: #{tpu_custom_call.1} parent=27 // pred_fallthru
          _
        %s224 = sand.u32 %s53, 1
        %s225 = scalar_lea.sflag [#allocation3], %s224
        %s226 = sand.u32 %s53, 1
        %s227 = smul.addr %s226, 256
        %s228 = scalar_lea.vmem [#allocation2], %s227
        %p229 = pneg %p66
        %p230 = pneg %p63
        %s231 = sand.u32 %s83, 1
        %s232 = scalar_lea.sflag [#allocation6], %s231
        %s233 = sand.u32 %s83, 1
        %s234 = smul.addr %s233, 256
        %s235 = scalar_lea.vmem [#allocation5], %s234
        %p236 = pneg %p96
        %p237 = pneg %p93
        %p238 = pneg %p124
        %p239 = pneg %p121
        %s240 = sand.u32 %s111, 1
        %s241 = scalar_lea.sflag [#allocation4], %s240
        %s242 = sand.u32 %s111, 1
        %s243 = smul.addr %s242, 8
        %s244 = scalar_lea.vmem [#allocation7], %s243
        %s245 = sadd.s32 %s28, %s29
        %s246 = smul.u32 32, %s245
        %s247 = ssub.s32 3, %s246
        %s248 = smul.u32 128, %s247
        %s249 = sadd.s32 %s28, %s29
        %s250 = smul.u32 32, %s249
        %s251 = ssub.s32 3, %s250
        %s252 = smul.u32 128, %s251
        %p253 = scmp.eq.s32.totalorder %s29, 0
        // Predicated region
        $region37: #{tpu_custom_call.1} parent=27 // pred_check
          %p254 = pneg %p253
        $region38: #{tpu_custom_call.1} parent=27 // pred_check_branch
          %256 = sbr.rel (%p254) target = $region40
        $region39: #{tpu_custom_call.1} parent=27 // pred_region
          %257 = vst [vmem:[%s244] sm:$0xff] 0.0
        $region40: #{tpu_custom_call.1} parent=27 // pred_fallthru
          _
        %s258 = sadd.s32 %s28, %s29
        %s259 = smul.u32 %s258, 256
        %v260 = vld [vmem:[%s210] sm:$0xff]
        %v261 = vld [vmem:[%s210 + $0x8] sm:$0xff]
        %v262 = vld [vmem:[%s210 + $0x10] sm:$0xff]
        %v263 = vld [vmem:[%s210 + $0x18] sm:$0xff]
        %v264 = vld [vmem:[%s210 + $0x20] sm:$0xff]
        %v265 = vld [vmem:[%s210 + $0x28] sm:$0xff]
        %v266 = vld [vmem:[%s210 + $0x30] sm:$0xff]
        %v267 = vld [vmem:[%s210 + $0x38] sm:$0xff]
        %v268 = vld [vmem:[%s210 + $0x40] sm:$0xff]
        %v269 = vld [vmem:[%s210 + $0x48] sm:$0xff]
        %v270 = vld [vmem:[%s210 + $0x50] sm:$0xff]
        %v271 = vld [vmem:[%s210 + $0x58] sm:$0xff]
        %v272 = vld [vmem:[%s210 + $0x60] sm:$0xff]
        %v273 = vld [vmem:[%s210 + $0x68] sm:$0xff]
        %v274 = vld [vmem:[%s210 + $0x70] sm:$0xff]
        %v275 = vld [vmem:[%s210 + $0x78] sm:$0xff]
        %v276 = vld [vmem:[%s210 + $0x80] sm:$0xff]
        %v277 = vld [vmem:[%s210 + $0x88] sm:$0xff]
        %v278 = vld [vmem:[%s210 + $0x90] sm:$0xff]
        %v279 = vld [vmem:[%s210 + $0x98] sm:$0xff]
        %v280 = vld [vmem:[%s210 + $0xa0] sm:$0xff]
        %v281 = vld [vmem:[%s210 + $0xa8] sm:$0xff]
        %v282 = vld [vmem:[%s210 + $0xb0] sm:$0xff]
        %v283 = vld [vmem:[%s210 + $0xb8] sm:$0xff]
        %v284 = vld [vmem:[%s210 + $0xc0] sm:$0xff]
        %v285 = vld [vmem:[%s210 + $0xc8] sm:$0xff]
        %v286 = vld [vmem:[%s210 + $0xd0] sm:$0xff]
        %v287 = vld [vmem:[%s210 + $0xd8] sm:$0xff]
        %v288 = vld [vmem:[%s210 + $0xe0] sm:$0xff]
        %v289 = vld [vmem:[%s210 + $0xe8] sm:$0xff]
        %v290 = vld [vmem:[%s210 + $0xf0] sm:$0xff]
        %v291 = vld [vmem:[%s210 + $0xf8] sm:$0xff]
        %v292 = vld [vmem:[%s219] sm:$0xff]
        %v293 = vld [vmem:[%s219 + $0x8] sm:$0xff]
        %v294 = vld [vmem:[%s219 + $0x10] sm:$0xff]
        %v295 = vld [vmem:[%s219 + $0x18] sm:$0xff]
        %v296 = vld [vmem:[%s219 + $0x20] sm:$0xff]
        %v297 = vld [vmem:[%s219 + $0x28] sm:$0xff]
        %v298 = vld [vmem:[%s219 + $0x30] sm:$0xff]
        %v299 = vld [vmem:[%s219 + $0x38] sm:$0xff]
        %v300 = vld [vmem:[%s219 + $0x40] sm:$0xff]
        %v301 = vld [vmem:[%s219 + $0x48] sm:$0xff]
        %v302 = vld [vmem:[%s219 + $0x50] sm:$0xff]
        %v303 = vld [vmem:[%s219 + $0x58] sm:$0xff]
        %v304 = vld [vmem:[%s219 + $0x60] sm:$0xff]
        %v305 = vld [vmem:[%s219 + $0x68] sm:$0xff]
        %v306 = vld [vmem:[%s219 + $0x70] sm:$0xff]
        %v307 = vld [vmem:[%s219 + $0x78] sm:$0xff]
        %v308 = vld [vmem:[%s219 + $0x80] sm:$0xff]
        %v309 = vld [vmem:[%s219 + $0x88] sm:$0xff]
        %v310 = vld [vmem:[%s219 + $0x90] sm:$0xff]
        %v311 = vld [vmem:[%s219 + $0x98] sm:$0xff]
        %v312 = vld [vmem:[%s219 + $0xa0] sm:$0xff]
        %v313 = vld [vmem:[%s219 + $0xa8] sm:$0xff]
        %v314 = vld [vmem:[%s219 + $0xb0] sm:$0xff]
        %v315 = vld [vmem:[%s219 + $0xb8] sm:$0xff]
        %v316 = vld [vmem:[%s219 + $0xc0] sm:$0xff]
        %v317 = vld [vmem:[%s219 + $0xc8] sm:$0xff]
        %v318 = vld [vmem:[%s219 + $0xd0] sm:$0xff]
        %v319 = vld [vmem:[%s219 + $0xd8] sm:$0xff]
        %v320 = vld [vmem:[%s219 + $0xe0] sm:$0xff]
        %v321 = vld [vmem:[%s219 + $0xe8] sm:$0xff]
        %v322 = vld [vmem:[%s219 + $0xf0] sm:$0xff]
        %v323 = vld [vmem:[%s219 + $0xf8] sm:$0xff]
        %v324 = vsub.f32 %v260, %v292
        %v325 = vsub.f32 %v261, %v293
        %v326 = vsub.f32 %v262, %v294
        %v327 = vsub.f32 %v263, %v295
        %v328 = vsub.f32 %v264, %v296
        %v329 = vsub.f32 %v265, %v297
        %v330 = vsub.f32 %v266, %v298
        %v331 = vsub.f32 %v267, %v299
        %v332 = vsub.f32 %v268, %v300
        %v333 = vsub.f32 %v269, %v301
        %v334 = vsub.f32 %v270, %v302
        %v335 = vsub.f32 %v271, %v303
        %v336 = vsub.f32 %v272, %v304
        %v337 = vsub.f32 %v273, %v305
        %v338 = vsub.f32 %v274, %v306
        %v339 = vsub.f32 %v275, %v307
        %v340 = vsub.f32 %v276, %v308
        %v341 = vsub.f32 %v277, %v309
        %v342 = vsub.f32 %v278, %v310
        %v343 = vsub.f32 %v279, %v311
        %v344 = vsub.f32 %v280, %v312
        %v345 = vsub.f32 %v281, %v313
        %v346 = vsub.f32 %v282, %v314
        %v347 = vsub.f32 %v283, %v315
        %v348 = vsub.f32 %v284, %v316
        %v349 = vsub.f32 %v285, %v317
        %v350 = vsub.f32 %v286, %v318
        %v351 = vsub.f32 %v287, %v319
        %v352 = vsub.f32 %v288, %v320
        %v353 = vsub.f32 %v289, %v321
        %v354 = vsub.f32 %v290, %v322
        %v355 = vsub.f32 %v291, %v323
        %v356 = vmul.f32 %v324, %v324
        %v357 = vmul.f32 %v325, %v325
        %v358 = vmul.f32 %v326, %v326
        %v359 = vmul.f32 %v327, %v327
        %v360 = vmul.f32 %v328, %v328
        %v361 = vmul.f32 %v329, %v329
        %v362 = vmul.f32 %v330, %v330
        %v363 = vmul.f32 %v331, %v331
        %v364 = vmul.f32 %v332, %v332
        %v365 = vmul.f32 %v333, %v333
        %v366 = vmul.f32 %v334, %v334
        %v367 = vmul.f32 %v335, %v335
        %v368 = vmul.f32 %v336, %v336
        %v369 = vmul.f32 %v337, %v337
        %v370 = vmul.f32 %v338, %v338
        %v371 = vmul.f32 %v339, %v339
        %v372 = vmul.f32 %v340, %v340
        %v373 = vmul.f32 %v341, %v341
        %v374 = vmul.f32 %v342, %v342
        %v375 = vmul.f32 %v343, %v343
        %v376 = vmul.f32 %v344, %v344
        %v377 = vmul.f32 %v345, %v345
        %v378 = vmul.f32 %v346, %v346
        %v379 = vmul.f32 %v347, %v347
        %v380 = vmul.f32 %v348, %v348
        %v381 = vmul.f32 %v349, %v349
        %v382 = vmul.f32 %v350, %v350
        %v383 = vmul.f32 %v351, %v351
        %v384 = vmul.f32 %v352, %v352
        %v385 = vmul.f32 %v353, %v353
        %v386 = vmul.f32 %v354, %v354
        %v387 = vmul.f32 %v355, %v355
        %v388 = vlaneseq
        %v389 = vshrl.u32 %v388, 7
        %v390 = vadd.s32 %v389, 8
        %v391 = vadd.s32 %v389, 16
        %v392 = vadd.s32 %v389, 24
        %v393 = vadd.s32 %v389, 32
        %v394 = vadd.s32 %v389, 40
        %v395 = vadd.s32 %v389, 48
        %v396 = vadd.s32 %v389, 56
        %v397 = vadd.s32 %v389, 64
        %v398 = vadd.s32 %v389, 72
        %v399 = vadd.s32 %v389, 80
        %v400 = vadd.s32 %v389, 88
        %v401 = vadd.s32 %v389, 96
        %v402 = vadd.s32 %v389, 104
        %v403 = vadd.s32 %v389, 112
        %v404 = vadd.s32 %v389, 120
        %v405 = vadd.s32 %v389, 128
        %v406 = vadd.s32 %v389, 136
        %v407 = vadd.s32 %v389, 144
        %v408 = vadd.s32 %v389, 152
        %v409 = vadd.s32 %v389, 160
        %v410 = vadd.s32 %v389, 168
        %v411 = vadd.s32 %v389, 176
        %v412 = vadd.s32 %v389, 184
        %v413 = vadd.s32 %v389, 192
        %v414 = vadd.s32 %v389, 200
        %v415 = vadd.s32 %v389, 208
        %v416 = vadd.s32 %v389, 216
        %v417 = vadd.s32 %v389, 224
        %v418 = vadd.s32 %v389, 232
        %v419 = vadd.s32 %v389, 240
        %v420 = vadd.s32 %v389, 248
        %s421 = sadd.s32 %s259, 0
        %v422 = vstv %s421
        %v423 = vadd.s32 %v389, %v422
        %v424 = vadd.s32 %v390, %v422
        %v425 = vadd.s32 %v391, %v422
        %v426 = vadd.s32 %v392, %v422
        %v427 = vadd.s32 %v393, %v422
        %v428 = vadd.s32 %v394, %v422
        %v429 = vadd.s32 %v395, %v422
        %v430 = vadd.s32 %v396, %v422
        %v431 = vadd.s32 %v397, %v422
        %v432 = vadd.s32 %v398, %v422
        %v433 = vadd.s32 %v399, %v422
        %v434 = vadd.s32 %v400, %v422
        %v435 = vadd.s32 %v401, %v422
        %v436 = vadd.s32 %v402, %v422
        %v437 = vadd.s32 %v403, %v422
        %v438 = vadd.s32 %v404, %v422
        %v439 = vadd.s32 %v405, %v422
        %v440 = vadd.s32 %v406, %v422
        %v441 = vadd.s32 %v407, %v422
        %v442 = vadd.s32 %v408, %v422
        %v443 = vadd.s32 %v409, %v422
        %v444 = vadd.s32 %v410, %v422
        %v445 = vadd.s32 %v411, %v422
        %v446 = vadd.s32 %v412, %v422
        %v447 = vadd.s32 %v413, %v422
        %v448 = vadd.s32 %v414, %v422
        %v449 = vadd.s32 %v415, %v422
        %v450 = vadd.s32 %v416, %v422
        %v451 = vadd.s32 %v417, %v422
        %v452 = vadd.s32 %v418, %v422
        %v453 = vadd.s32 %v419, %v422
        %v454 = vadd.s32 %v420, %v422
        %vm455 = vcmp.lt.s32.totalorder %v423, 24
        %vm456 = vcmp.lt.s32.totalorder %v424, 24
        %vm457 = vcmp.lt.s32.totalorder %v425, 24
        %vm458 = vcmp.lt.s32.totalorder %v426, 24
        %vm459 = vcmp.lt.s32.totalorder %v427, 24
        %vm460 = vcmp.lt.s32.totalorder %v428, 24
        %vm461 = vcmp.lt.s32.totalorder %v429, 24
        %vm462 = vcmp.lt.s32.totalorder %v430, 24
        %vm463 = vcmp.lt.s32.totalorder %v431, 24
        %vm464 = vcmp.lt.s32.totalorder %v432, 24
        %vm465 = vcmp.lt.s32.totalorder %v433, 24
        %vm466 = vcmp.lt.s32.totalorder %v434, 24
        %vm467 = vcmp.lt.s32.totalorder %v435, 24
        %vm468 = vcmp.lt.s32.totalorder %v436, 24
        %vm469 = vcmp.lt.s32.totalorder %v437, 24
        %vm470 = vcmp.lt.s32.totalorder %v438, 24
        %vm471 = vcmp.lt.s32.totalorder %v439, 24
        %vm472 = vcmp.lt.s32.totalorder %v440, 24
        %vm473 = vcmp.lt.s32.totalorder %v441, 24
        %vm474 = vcmp.lt.s32.totalorder %v442, 24
        %vm475 = vcmp.lt.s32.totalorder %v443, 24
        %vm476 = vcmp.lt.s32.totalorder %v444, 24
        %vm477 = vcmp.lt.s32.totalorder %v445, 24
        %vm478 = vcmp.lt.s32.totalorder %v446, 24
        %vm479 = vcmp.lt.s32.totalorder %v447, 24
        %vm480 = vcmp.lt.s32.totalorder %v448, 24
        %vm481 = vcmp.lt.s32.totalorder %v449, 24
        %vm482 = vcmp.lt.s32.totalorder %v450, 24
        %vm483 = vcmp.lt.s32.totalorder %v451, 24
        %vm484 = vcmp.lt.s32.totalorder %v452, 24
        %vm485 = vcmp.lt.s32.totalorder %v453, 24
        %vm486 = vcmp.lt.s32.totalorder %v454, 24
        %v487 = vsel %vm455, 1, 0
        %v488 = vsel %vm456, 1, 0
        %v489 = vsel %vm457, 1, 0
        %v490 = vsel %vm458, 1, 0
        %v491 = vsel %vm459, 1, 0
        %v492 = vsel %vm460, 1, 0
        %v493 = vsel %vm461, 1, 0
        %v494 = vsel %vm462, 1, 0
        %v495 = vsel %vm463, 1, 0
        %v496 = vsel %vm464, 1, 0
        %v497 = vsel %vm465, 1, 0
        %v498 = vsel %vm466, 1, 0
        %v499 = vsel %vm467, 1, 0
        %v500 = vsel %vm468, 1, 0
        %v501 = vsel %vm469, 1, 0
        %v502 = vsel %vm470, 1, 0
        %v503 = vsel %vm471, 1, 0
        %v504 = vsel %vm472, 1, 0
        %v505 = vsel %vm473, 1, 0
        %v506 = vsel %vm474, 1, 0
        %v507 = vsel %vm475, 1, 0
        %v508 = vsel %vm476, 1, 0
        %v509 = vsel %vm477, 1, 0
        %v510 = vsel %vm478, 1, 0
        %v511 = vsel %vm479, 1, 0
        %v512 = vsel %vm480, 1, 0
        %v513 = vsel %vm481, 1, 0
        %v514 = vsel %vm482, 1, 0
        %v515 = vsel %vm483, 1, 0
        %v516 = vsel %vm484, 1, 0
        %v517 = vsel %vm485, 1, 0
        %v518 = vsel %vm486, 1, 0
        %vm519 = vcmp.eq.s32.totalorder %v487, 1
        %vm520 = vcmp.eq.s32.totalorder %v488, 1
        %vm521 = vcmp.eq.s32.totalorder %v489, 1
        %vm522 = vcmp.eq.s32.totalorder %v490, 1
        %vm523 = vcmp.eq.s32.totalorder %v491, 1
        %vm524 = vcmp.eq.s32.totalorder %v492, 1
        %vm525 = vcmp.eq.s32.totalorder %v493, 1
        %vm526 = vcmp.eq.s32.totalorder %v494, 1
        %vm527 = vcmp.eq.s32.totalorder %v495, 1
        %vm528 = vcmp.eq.s32.totalorder %v496, 1
        %vm529 = vcmp.eq.s32.totalorder %v497, 1
        %vm530 = vcmp.eq.s32.totalorder %v498, 1
        %vm531 = vcmp.eq.s32.totalorder %v499, 1
        %vm532 = vcmp.eq.s32.totalorder %v500, 1
        %vm533 = vcmp.eq.s32.totalorder %v501, 1
        %vm534 = vcmp.eq.s32.totalorder %v502, 1
        %vm535 = vcmp.eq.s32.totalorder %v503, 1
        %vm536 = vcmp.eq.s32.totalorder %v504, 1
        %vm537 = vcmp.eq.s32.totalorder %v505, 1
        %vm538 = vcmp.eq.s32.totalorder %v506, 1
        %vm539 = vcmp.eq.s32.totalorder %v507, 1
        %vm540 = vcmp.eq.s32.totalorder %v508, 1
        %vm541 = vcmp.eq.s32.totalorder %v509, 1
        %vm542 = vcmp.eq.s32.totalorder %v510, 1
        %vm543 = vcmp.eq.s32.totalorder %v511, 1
        %vm544 = vcmp.eq.s32.totalorder %v512, 1
        %vm545 = vcmp.eq.s32.totalorder %v513, 1
        %vm546 = vcmp.eq.s32.totalorder %v514, 1
        %vm547 = vcmp.eq.s32.totalorder %v515, 1
        %vm548 = vcmp.eq.s32.totalorder %v516, 1
        %vm549 = vcmp.eq.s32.totalorder %v517, 1
        %vm550 = vcmp.eq.s32.totalorder %v518, 1
        %v551 = vsel %vm519, %v356, 0.0
        %v552 = vsel %vm520, %v357, 0.0
        %v553 = vsel %vm521, %v358, 0.0
        %v554 = vsel %vm522, %v359, 0.0
        %v555 = vsel %vm523, %v360, 0.0
        %v556 = vsel %vm524, %v361, 0.0
        %v557 = vsel %vm525, %v362, 0.0
        %v558 = vsel %vm526, %v363, 0.0
        %v559 = vsel %vm527, %v364, 0.0
        %v560 = vsel %vm528, %v365, 0.0
        %v561 = vsel %vm529, %v366, 0.0
        %v562 = vsel %vm530, %v367, 0.0
        %v563 = vsel %vm531, %v368, 0.0
        %v564 = vsel %vm532, %v369, 0.0
        %v565 = vsel %vm533, %v370, 0.0
        %v566 = vsel %vm534, %v371, 0.0
        %v567 = vsel %vm535, %v372, 0.0
        %v568 = vsel %vm536, %v373, 0.0
        %v569 = vsel %vm537, %v374, 0.0
        %v570 = vsel %vm538, %v375, 0.0
        %v571 = vsel %vm539, %v376, 0.0
        %v572 = vsel %vm540, %v377, 0.0
        %v573 = vsel %vm541, %v378, 0.0
        %v574 = vsel %vm542, %v379, 0.0
        %v575 = vsel %vm543, %v380, 0.0
        %v576 = vsel %vm544, %v381, 0.0
        %v577 = vsel %vm545, %v382, 0.0
        %v578 = vsel %vm546, %v383, 0.0
        %v579 = vsel %vm547, %v384, 0.0
        %v580 = vsel %vm548, %v385, 0.0
        %v581 = vsel %vm549, %v386, 0.0
        %v582 = vsel %vm550, %v387, 0.0
        %v583 = vadd.f32 %v551, %v552
        %v584 = vadd.f32 %v583, %v553
        %v585 = vadd.f32 %v584, %v554
        %v586 = vadd.f32 %v585, %v555
        %v587 = vadd.f32 %v586, %v556
        %v588 = vadd.f32 %v587, %v557
        %v589 = vadd.f32 %v588, %v558
        %v590 = vadd.f32 %v589, %v559
        %v591 = vadd.f32 %v590, %v560
        %v592 = vadd.f32 %v591, %v561
        %v593 = vadd.f32 %v592, %v562
        %v594 = vadd.f32 %v593, %v563
        %v595 = vadd.f32 %v594, %v564
        %v596 = vadd.f32 %v595, %v565
        %v597 = vadd.f32 %v596, %v566
        %v598 = vadd.f32 %v597, %v567
        %v599 = vadd.f32 %v598, %v568
        %v600 = vadd.f32 %v599, %v569
        %v601 = vadd.f32 %v600, %v570
        %v602 = vadd.f32 %v601, %v571
        %v603 = vadd.f32 %v602, %v572
        %v604 = vadd.f32 %v603, %v573
        %v605 = vadd.f32 %v604, %v574
        %v606 = vadd.f32 %v605, %v575
        %v607 = vadd.f32 %v606, %v576
        %v608 = vadd.f32 %v607, %v577
        %v609 = vadd.f32 %v608, %v578
        %v610 = vadd.f32 %v609, %v579
        %v611 = vadd.f32 %v610, %v580
        %v612 = vadd.f32 %v611, %v581
        %v613 = vadd.f32 %v612, %v582
        %v614 = vld [vmem:[%s244] sm:$0xff]
        %v615 = vmul.f32 %v613, 0.00390625
        %v616 = vadd.f32 %v614, %v615
        %617 = vst [vmem:[%s244] sm:$0xff] %v616
        %s618 = sand.u32 %s111, 1
        %s619 = scalar_lea.sflag [#allocation4], %s618
        %s620 = sand.u32 %s111, 1
        %s621 = smul.addr %s620, 8
        %s622 = scalar_lea.vmem [#allocation7], %s621
        // Predicated region
        $region41: #{tpu_custom_call.1} parent=27 // pred_check
          %p623 = pneg %p121
        $region42: #{tpu_custom_call.1} parent=27 // pred_check_branch
          %625 = sbr.rel (%p623) target = $region44
        $region43: #{tpu_custom_call.1} parent=27 // pred_region
          %s627 = ssub.s32 128, 128
          %628 = vsyncadd %s619, %s627
          %s629 = sadd.s32 %s28, %s27
          %s630 = smul.addr %s629, 128
          %s631 = scalar_lea.hbm %s2, %s630
          %s633 = sshll.u32 %s622, 4
          %s634 = int_to_ptr.vmem [resolvable:$true] %s633
          %636 = dma.vmem_to_hbm [thread:$0]  %s634, 128, %s631, %s619
        $region44: #{tpu_custom_call.1} parent=27 // pred_fallthru
          _
      $region28: #{tpu_custom_call.1} parent=5 // pred_fallthru
        _
      %p637 = scmp.le.s32.totalorder 2, %s17
      // Predicated region
      $region45: #{tpu_custom_call.1} parent=5 // pred_check
        %p638 = pneg %p637
      $region46: #{tpu_custom_call.1} parent=5 // pred_check_branch
        %640 = sbr.rel (%p638) target = $region48
      $region47: #{tpu_custom_call.1} parent=5 // pred_region
        %s641 = ssub.s32 %s17, 2
        // Predicated region
        $region49: #{tpu_custom_call.1} parent=47 // pred_check
          %p642 = pneg %p127
        $region50: #{tpu_custom_call.1} parent=47 // pred_check_branch
          %644 = sbr.rel (%p642) target = $region52
        $region51: #{tpu_custom_call.1} parent=47 // pred_region
          %s645 = sand.u32 %s112, 1
          %s646 = scalar_lea.sflag [#allocation4], %s645
          %s647 = sand.u32 %s112, 1
          %s648 = smul.addr %s647, 8
          %s649 = scalar_lea.vmem [#allocation7], %s648
          %650 = dma.done %s646, 128
        $region52: #{tpu_custom_call.1} parent=47 // pred_fallthru
          _
      $region48: #{tpu_custom_call.1} parent=5 // pred_fallthru
        _
    $region6: #{tpu_custom_call.1} parent=1 // loop_footer
      %s21 = sadd.s32 1, %s17
    $region7: #{tpu_custom_call.1} parent=1 // loop_footer_branch
      %16 = sbr.rel target = $region3
    $region8: #{tpu_custom_call.1} parent=1 // loop_exit
      _
    %651 = vsyncpa [#allocation3], 1
    %s652 = scalar_lea.sflag [#allocation3], 1
    %653 = vsyncpa %s652, 1
    %654 = vsyncpa [#allocation6], 1
    %s655 = scalar_lea.sflag [#allocation6], 1
    %656 = vsyncpa %s655, 1
    %657 = vsyncpa [#allocation4], 1
    %s658 = scalar_lea.sflag [#allocation4], 1
    %659 = vsyncpa %s658, 1

</llo_original>
